<compile_context>
chip_gen: v5e
topology: v5e:2x2
jax: 0.10.0
libtpu: 0.0.40
codegen_flags: <defaults>
</compile_context>

<pallas_src>
import functools
import math

import jax
import jax.numpy as jnp
import numpy as np
from jax.experimental import pallas as pl
from jax.experimental.pallas import tpu as pltpu


_TB_MAX = 1024  # batch tile: multiple of 256, amortizes per-grid-step fixed cost


# ---------------------------------------------------------------------------
# Pallas kernel: y_tile = x_tile @ w_t + bias   (w_t already masked + transposed)
# ---------------------------------------------------------------------------
def _linear_bias_kernel(x_ref, w_ref, b_ref, o_ref):
    # x_ref: (TB, I), w_ref: (I, O), b_ref: (1, O), o_ref: (TB, O)
    acc = jnp.dot(x_ref[...], w_ref[...], preferred_element_type=jnp.float32)
    o_ref[...] = (acc + b_ref[...]).astype(o_ref.dtype)


# ---------------------------------------------------------------------------
# One-time parameter preparation: fold the static mask, pre-transpose. No padding.
# ---------------------------------------------------------------------------
def prepare_params(weight, mask, bias):
    """weight/mask: (O, I), bias: (O,) -> w_t: (I, O), bias2d: (1, O)."""
    out_dim, _ = weight.shape
    w_t = jnp.asarray((weight * mask).T)            # mask folded once, (I, O)
    bias2d = jnp.asarray(bias).reshape(1, out_dim)
    return w_t, bias2d


# ---------------------------------------------------------------------------
# Pallas wrapper: tile over batch, weight/bias VMEM-resident, un-padded output.
# ---------------------------------------------------------------------------
@functools.partial(jax.jit, static_argnames=("tb_max",))
def masked_linear(x, w_t, bias2d, tb_max=_TB_MAX):
    """x: (B, I); w_t: (I, O) pre-masked/transposed; bias2d: (1, O) -> (B, O)."""
    B, in_dim = x.shape
    in_dim_w, out_dim = w_t.shape
    assert in_dim == in_dim_w

    if B <= tb_max:
        TB = B          # single full-extent tile (legal for any B, no batch padding)
    else:
        TB = tb_max     # multiple of 8 -> ragged last block handled by Pallas
    num_tiles = pl.cdiv(B, TB)

    itemsize = jnp.dtype(x.dtype).itemsize
    cost = pl.CostEstimate(
        flops=2 * B * in_dim * out_dim,
        transcendentals=0,
        bytes_accessed=(B * in_dim + in_dim * out_dim + B * out_dim + out_dim) * itemsize,
    )

    return pl.pallas_call(
        _linear_bias_kernel,
        out_shape=jax.ShapeDtypeStruct((B, out_dim), x.dtype),
        grid_spec=pl.GridSpec(
            grid=(num_tiles,),
            in_specs=[
                pl.BlockSpec((TB, in_dim), lambda i: (i, 0)),       # x: streamed over batch
                pl.BlockSpec((in_dim, out_dim), lambda i: (0, 0)),  # weight: VMEM-resident
                pl.BlockSpec((1, out_dim), lambda i: (0, 0)),       # bias:   VMEM-resident
            ],
            out_specs=pl.BlockSpec((TB, out_dim), lambda i: (i, 0)),
        ),
        compiler_params=pltpu.CompilerParams(
            dimension_semantics=("parallel",),       # shard batch tiles across TCs (v7x)
            vmem_limit_bytes=32 * 1024 * 1024,       # raise v5e default; match v6e/v7x
        ),
        cost_estimate=cost,
    )(x, w_t, bias2d)


def marker2skeleton_apply(x, w_t, bias2d, *, min_pallas_batch=512):
    """Dispatcher: tiny batches -> plain XLA dot (pallas_call fixed overhead dominates)."""
    if x.shape[0] < min_pallas_batch:
        return (x @ w_t + bias2d[0]).astype(x.dtype)
    return masked_linear(x, w_t, bias2d)


# ---------------------------------------------------------------------------
# Deterministic parameter construction, mirroring the PyTorch __init__.
# ---------------------------------------------------------------------------
def build_params(in_channels, out_channels, marker_num, joint_num, edges, seed=0):
    out_features = out_channels * joint_num
    in_features = in_channels * marker_num

    weight = np.zeros((out_features, in_features), dtype=np.float32)
    mask = np.zeros((out_features, in_features), dtype=np.float32)

    # kaiming_uniform_(tmp, a=sqrt(5)) on (out_channels, in_channels):
    # gain = sqrt(2/(1+a^2)) = sqrt(1/3); fan_in = in_channels -> bound = 1/sqrt(fan_in)
    k_bound = 1.0 / math.sqrt(in_channels)

    rng = np.random.RandomState(seed)
    for edge_idx in range(edges.shape[1]):
        edge = edges[:, edge_idx]
        src, dst = int(edge[0]), int(edge[1])
        tmp = rng.uniform(-k_bound, k_bound, size=(out_channels, in_channels)).astype(np.float32)
        mask[out_channels * dst: out_channels * (dst + 1),
             in_channels * src: in_channels * (src + 1)] = 1.0
        weight[out_channels * dst: out_channels * (dst + 1),
               in_channels * src: in_channels * (src + 1)] = tmp

    b_bound = 1.0 / math.sqrt(in_features)
    bias = rng.uniform(-b_bound, b_bound, size=(out_features,)).astype(np.float32)

    return jnp.asarray(weight), jnp.asarray(mask), jnp.asarray(bias)


# ---------------------------------------------------------------------------
# Main
# ---------------------------------------------------------------------------
if __name__ == "__main__":
    in_channels = 4
    out_channels = 4
    marker_num = 16
    joint_num = 8

    # edges: (2, E) — edges[0] = source marker idx, edges[1] = target joint idx.
    src = np.arange(marker_num, dtype=np.int64)
    dst = np.repeat(np.arange(joint_num, dtype=np.int64), 2)
    edges = np.stack([src, dst], axis=0)  # (2, 16)

    weight, mask, bias = build_params(in_channels, out_channels, marker_num, joint_num,
                                      edges, seed=0)

    # Quantize weights (and x below) to bf16-representable f32 values so the result is
    # insensitive to whether the MXU rounds f32 operands to bf16 (DEFAULT precision) or
    # runs full-f32 passes — lets us assert tightly against the fp32 numpy reference.
    weight = weight.astype(jnp.bfloat16).astype(jnp.float32)

    in_features = in_channels * marker_num      # 64
    out_features = out_channels * joint_num     # 32

    # One-time prep: fold mask, transpose to (I, O). No padding anywhere.
    w_t, bias2d = prepare_params(weight, mask, bias)

    w_masked_np = np.asarray(weight * mask)     # (O, I) reference weight
    bias_np = np.asarray(bias)

    def run_and_check(batch, subkey):
        x = jax.random.normal(subkey, (batch, in_features), dtype=jnp.float32)
        x = x.astype(jnp.bfloat16).astype(jnp.float32)   # bf16-representable (see above)
        y = jax.block_until_ready(masked_linear(x, w_t, bias2d))
        assert y.shape == (batch, out_features)
        y_ref = np.asarray(x) @ w_masked_np.T + bias_np  # pure-numpy fp32 reference
        np.testing.assert_allclose(np.asarray(y), y_ref, rtol=1e-4, atol=1e-4)

    k1, k2 = jax.random.split(jax.random.PRNGKey(0))
    run_and_check(64, k1)      # small demo batch: single full-extent tile, grid = 1
    run_and_check(1224, k2)    # multi-tile grid (TB=1024) with a ragged last block

    print("KERNEL_OK")
</pallas_src>

<mosaic_0001>
module attributes {stable_mosaic.version = 11 : i64} {
  func.func @_linear_bias_kernel(%arg0: i32, %arg1: memref<64x64xf32, #tpu.memory_space<vmem>>, %arg2: memref<64x32xf32, #tpu.memory_space<vmem>>, %arg3: memref<1x32xf32, #tpu.memory_space<vmem>>, %arg4: memref<64x32xf32, #tpu.memory_space<vmem>>) attributes {dimension_semantics = [#tpu.dimension_semantics<parallel>], iteration_bounds = array<i64: 1>, scalar_prefetch = 0 : i64, scratch_operands = 0 : i64, tpu.core_type = #tpu.core_type<tc>, window_params = [{transform_indices = @transform_0, window_bounds = array<i64: 64, 64>}, {pipeline_mode = #tpu.pipeline_mode<synchronous>, transform_indices = @transform_1, window_bounds = array<i64: 64, 32>}, {pipeline_mode = #tpu.pipeline_mode<synchronous>, transform_indices = @transform_2, window_bounds = array<i64: 1, 32>}, {transform_indices = @transform_3, window_bounds = array<i64: 64, 32>}]} {
    %c0 = arith.constant 0 : index
    %c0_0 = arith.constant 0 : index
    %0 = vector.load %arg1[%c0, %c0_0] : memref<64x64xf32, #tpu.memory_space<vmem>>, vector<64x64xf32>
    %c0_1 = arith.constant 0 : index
    %c0_2 = arith.constant 0 : index
    %1 = vector.load %arg2[%c0_1, %c0_2] : memref<64x32xf32, #tpu.memory_space<vmem>>, vector<64x32xf32>
    %cst = arith.constant dense<0.000000e+00> : vector<64x32xf32>
    %2 = tpu.matmul %0, %1, %cst {dimension_numbers = #tpu.dot_dimension_numbers<[1], [0], [0], [1], [0, 0, 1, 1], [], []>} : vector<64x64xf32>, vector<64x32xf32>, vector<64x32xf32> -> vector<64x32xf32>
    %c0_3 = arith.constant 0 : index
    %c0_4 = arith.constant 0 : index
    %3 = vector.load %arg3[%c0_3, %c0_4] : memref<1x32xf32, #tpu.memory_space<vmem>>, vector<1x32xf32>
    %4 = vector.broadcast %3 : vector<1x32xf32> to vector<64x32xf32>
    %5 = arith.addf %2, %4 : vector<64x32xf32>
    %c0_5 = arith.constant 0 : index
    %c0_6 = arith.constant 0 : index
    %6 = vector.load %arg4[%c0_5, %c0_6] : memref<64x32xf32, #tpu.memory_space<vmem>>, vector<64x32xf32>
    tpu.vector_store %arg4[%c0_5, %c0_6], %5 {strides = array<i32>} : memref<64x32xf32, #tpu.memory_space<vmem>>, vector<64x32xf32>,
    return
  }
  func.func @transform_0(%arg0: i32) -> (i32, i32) {
    %c0_i32 = arith.constant 0 : i32
    %c0_i32_0 = arith.constant 0 : i32
    return %arg0, %c0_i32 : i32, i32
  }
  func.func @transform_1(%arg0: i32) -> (i32, i32) {
    %c0_i32 = arith.constant 0 : i32
    %c0_i32_0 = arith.constant 0 : i32
    %c0_i32_1 = arith.constant 0 : i32
    return %c0_i32, %c0_i32_0 : i32, i32
  }
  func.func @transform_2(%arg0: i32) -> (i32, i32) {
    %c0_i32 = arith.constant 0 : i32
    %c0_i32_0 = arith.constant 0 : i32
    %c0_i32_1 = arith.constant 0 : i32
    return %c0_i32, %c0_i32_0 : i32, i32
  }
  func.func @transform_3(%arg0: i32) -> (i32, i32) {
    %c0_i32 = arith.constant 0 : i32
    %c0_i32_0 = arith.constant 0 : i32
    return %arg0, %c0_i32 : i32, i32
  }
}

</mosaic_0001>

<llo_original>
// kernel: masked_linear.1
$region0: #{masked_linear.1}
  #allocation0 [shape = 'u32[]', space=smem, size = 0x4, offset = 0x4, fixed_abs, tag = 'smem constant byte address 0x4 - core index']
  #allocation1 [shape = 'u32[72,128]{1,0:T(1,128)}', space=vmem, size = 0x9000, scoped, tag = 'internal scratch']
  %s0 = inlined_call_operand.vmem [shape: f32[64,64], index: 0, kind: input, shape index: {}]
  %s1 = inlined_call_operand.vmem [shape: f32[64,32], index: 1, kind: input, shape index: {}]
  %s2 = inlined_call_operand.vmem [shape: f32[1,32], index: 2, kind: input, shape index: {}]
  %s3 = inlined_call_operand.vmem [shape: f32[64,32], index: 3, kind: output, shape index: {}]
  %s4 = sld [smem:[#allocation0]]
  $region22: #{masked_linear.1} parent=0
    _
  %s6 = ssub.s32 1, %s4
  %s7 = scalar_select 0, %s6, %s4
  // Predicated region
  $region2: #{masked_linear.1} parent=0 // pred_check
    _
  $region3: #{masked_linear.1} parent=0 // pred_check_branch
    %9 = sbr.rel (0) target = $region5
  $region4: #{masked_linear.1} parent=0 // pred_region
    _
  $region5: #{masked_linear.1} parent=0 // pred_fallthru
    _
  // Predicated region
  $region6: #{masked_linear.1} parent=0 // pred_check
    _
  $region7: #{masked_linear.1} parent=0 // pred_check_branch
    %11 = sbr.rel (0) target = $region9
  $region8: #{masked_linear.1} parent=0 // pred_region
    _
  $region9: #{masked_linear.1} parent=0 // pred_fallthru
    _
  // Predicated region
  $region10: #{masked_linear.1} parent=0 // pred_check
    _
  $region11: #{masked_linear.1} parent=0 // pred_check_branch
    %13 = sbr.rel (0) target = $region13
  $region12: #{masked_linear.1} parent=0 // pred_region
    _
  $region13: #{masked_linear.1} parent=0 // pred_fallthru
    _
  %v14 = vld [vmem:[%s0] sm:$0xff]
  %v15 = vld [vmem:[%s0 + $0x8] sm:$0xff]
  %v16 = vld [vmem:[%s0 + $0x10] sm:$0xff]
  %v17 = vld [vmem:[%s0 + $0x18] sm:$0xff]
  %v18 = vld [vmem:[%s0 + $0x20] sm:$0xff]
  %v19 = vld [vmem:[%s0 + $0x28] sm:$0xff]
  %v20 = vld [vmem:[%s0 + $0x30] sm:$0xff]
  %v21 = vld [vmem:[%s0 + $0x38] sm:$0xff]
  %v22 = vld [vmem:[%s1] sm:$0xff]
  %v23 = vld [vmem:[%s1 + $0x8] sm:$0xff]
  %v24 = vld [vmem:[%s1 + $0x10] sm:$0xff]
  %v25 = vld [vmem:[%s1 + $0x18] sm:$0xff]
  %v26 = vld [vmem:[%s1 + $0x20] sm:$0xff]
  %v27 = vld [vmem:[%s1 + $0x28] sm:$0xff]
  %v28 = vld [vmem:[%s1 + $0x30] sm:$0xff]
  %v29 = vld [vmem:[%s1 + $0x38] sm:$0xff]
  %v30 = vld [vmem:[%s2] sm:$0x1]
  %v32 = vperm.slane %v30, 0
  %vm34 = vcmask 523264
  %v36 = vsel %vm34, %v14, 0
  %v39 = vsel %vm34, %v15, 0
  %v42 = vsel %vm34, %v16, 0
  %v45 = vsel %vm34, %v17, 0
  %v48 = vsel %vm34, %v18, 0
  %v51 = vsel %vm34, %v19, 0
  %v54 = vsel %vm34, %v20, 0
  %v57 = vsel %vm34, %v21, 0
  %59 = vmatpush.msra.mxu0 0.0
  %60 = vmatpush.msra.mxu0 0.0
  %61 = vmatpush.msra.mxu0 0.0
  %62 = vmatpush.msra.mxu0 0.0
  %63 = vmatpush.msra.mxu0 0.0
  %64 = vmatpush.msra.mxu0 0.0
  %65 = vmatpush.msra.mxu0 0.0
  %66 = vmatpush.msra.mxu0 0.0
  %67 = vmatpush.msra.mxu0 %v29
  %68 = vmatpush.msra.mxu0 %v28
  %69 = vmatpush.msra.mxu0 %v27
  %70 = vmatpush.msra.mxu0 %v26
  %71 = vmatpush.msra.mxu0 %v25
  %72 = vmatpush.msra.mxu0 %v24
  %73 = vmatpush.msra.mxu0 %v23
  %74 = vmatpush.msra.mxu0 %v22
  %75 = vmatmul.f32.gmra.mxu0 %v36
  %v76 = vpop.f32.mrf.mxu0
  %v77 = vadd.f32 %v32, %v76
  %78 = vmatmul.f32.gmra.mxu0 %v39
  %v79 = vpop.f32.mrf.mxu0
  %v80 = vadd.f32 %v32, %v79
  %81 = vmatmul.f32.gmra.mxu0 %v42
  %v82 = vpop.f32.mrf.mxu0
  %v83 = vadd.f32 %v32, %v82
  %84 = vmatmul.f32.gmra.mxu0 %v45
  %v85 = vpop.f32.mrf.mxu0
  %v86 = vadd.f32 %v32, %v85
  %87 = vmatmul.f32.gmra.mxu0 %v48
  %v88 = vpop.f32.mrf.mxu0
  %v89 = vadd.f32 %v32, %v88
  %90 = vmatmul.f32.gmra.mxu0 %v51
  %v91 = vpop.f32.mrf.mxu0
  %v92 = vadd.f32 %v32, %v91
  %93 = vmatmul.f32.gmra.mxu0 %v54
  %v94 = vpop.f32.mrf.mxu0
  %v95 = vadd.f32 %v32, %v94
  %96 = vmatmul.f32.gmra.mxu0 %v57
  %v97 = vpop.f32.mrf.mxu0
  %v98 = vadd.f32 %v32, %v97
  %99 = vdwg.mxu0
  %vm100 = vcmask 261120
  %101 = vst.msk [vmem:[%s3] sm:$0xff] %vm100, %v77
  %102 = vst.msk [vmem:[%s3 + $0x8] sm:$0xff] %vm100, %v80
  %103 = vst.msk [vmem:[%s3 + $0x10] sm:$0xff] %vm100, %v83
  %104 = vst.msk [vmem:[%s3 + $0x18] sm:$0xff] %vm100, %v86
  %105 = vst.msk [vmem:[%s3 + $0x20] sm:$0xff] %vm100, %v89
  %106 = vst.msk [vmem:[%s3 + $0x28] sm:$0xff] %vm100, %v92
  %107 = vst.msk [vmem:[%s3 + $0x30] sm:$0xff] %vm100, %v95
  %108 = vst.msk [vmem:[%s3 + $0x38] sm:$0xff] %vm100, %v98
  // Predicated region
  $region14: #{masked_linear.1} parent=0 // pred_check
    _
  $region15: #{masked_linear.1} parent=0 // pred_check_branch
    %110 = sbr.rel (0) target = $region17
  $region16: #{masked_linear.1} parent=0 // pred_region
    _
  $region17: #{masked_linear.1} parent=0 // pred_fallthru
    _
  // Predicated region
  $region18: #{masked_linear.1} parent=0 // pred_check
    _
  $region19: #{masked_linear.1} parent=0 // pred_check_branch
    %112 = sbr.rel (0) target = $region21
  $region20: #{masked_linear.1} parent=0 // pred_region
    _
  $region21: #{masked_linear.1} parent=0 // pred_fallthru
    _

</llo_original>
